<compile_context>
chip_gen: v6e
topology: v6e:2x2x1
jax: 0.10.0
libtpu: 0.0.40
codegen_flags: <defaults>
</compile_context>

<pallas_src>
import numpy as np
import jax
import jax.numpy as jnp
from jax.experimental import pallas as pl
from jax.experimental.pallas import tpu as pltpu

N_QUBITS = 4


# ----------------------------- Pallas kernel ------------------------------ #
def quantum_expval_kernel(coef_ref, x_ref, o_ref):
    # coef_ref: (2,)       f32 in SMEM  -- [a, b] precomputed weight scalars
    # x_ref:    (2, TB)    f32 in VMEM  -- rows are x0, x1 for TB samples (lanes)
    # o_ref:    (1, TB)    f32 in VMEM  -- PauliZ(0) expectation per sample
    a = coef_ref[0]                      # cos(w4)
    b = coef_ref[1]                      # sin(w4)*cos(w0)*sin(w1)

    x0 = x_ref[0:1, :]                   # (1, TB) -- full lane-dense rows
    x1 = x_ref[1:2, :]                   # (1, TB)

    # Exact closed form of <Z_0> for this circuit.
    o_ref[...] = a * jnp.cos(x0) - b * (jnp.sin(x0) * jnp.sin(x1))


def hybrid_model_forward(x, weights, *, max_tb=1024):
    """x: (B, N_QUBITS) float; weights: (2*N_QUBITS,) float -> (B,) float32."""
    B, nq = x.shape
    assert nq == N_QUBITS

    # Fold the weight-dependent part of the closed form into two scalars once.
    w = weights.astype(jnp.float32)
    a = jnp.cos(w[4])
    b = jnp.sin(w[4]) * jnp.cos(w[0]) * jnp.sin(w[1])
    coefs = jnp.stack([a, b])            # (2,) -> SMEM

    # Lane-dense layout: only the two used feature rows, batch on lanes.
    x_t = x.astype(jnp.float32)[:, :2].T                 # (2, B)

    # 128-aligned batch tile; pad the batch so every store is full-width.
    tb = min(max_tb, 128 * pl.cdiv(B, 128))
    b_pad = tb * pl.cdiv(B, tb)
    if b_pad != B:
        x_t = jnp.pad(x_t, ((0, 0), (0, b_pad - B)))

    out = pl.pallas_call(
        quantum_expval_kernel,
        out_shape=jax.ShapeDtypeStruct((1, b_pad), jnp.float32),
        grid=(b_pad // tb,),
        in_specs=[
            pl.BlockSpec(memory_space=pltpu.MemorySpace.SMEM),   # coefs (whole, SMEM)
            pl.BlockSpec((2, tb), lambda i: (0, i)),             # x0/x1 rows, batch tile
        ],
        out_specs=pl.BlockSpec((1, tb), lambda i: (0, i)),
        compiler_params=pltpu.CompilerParams(
            dimension_semantics=("parallel",)),
    )(coefs, x_t)
    return out[0, :B]


# ------------------- Reference: exact statevector simulator ---------------- #
_I2 = np.eye(2, dtype=np.complex128)
_X = np.array([[0, 1], [1, 0]], dtype=np.complex128)
_P0 = np.array([[1, 0], [0, 0]], dtype=np.complex128)
_P1 = np.array([[0, 0], [0, 1]], dtype=np.complex128)


def _rx(t):
    c, s = np.cos(t / 2), np.sin(t / 2)
    return np.array([[c, -1j * s], [-1j * s, c]], dtype=np.complex128)


def _rz(t):
    return np.array([[np.exp(-1j * t / 2), 0], [0, np.exp(1j * t / 2)]],
                    dtype=np.complex128)


def _kron_all(ops):
    out = ops[0]
    for o in ops[1:]:
        out = np.kron(out, o)
    return out


def _single(gate, wire, n=N_QUBITS):
    return _kron_all([gate if q == wire else _I2 for q in range(n)])


def _cnot(c, t, n=N_QUBITS):
    a = _kron_all([_P0 if q == c else _I2 for q in range(n)])
    b = _kron_all([_P1 if q == c else (_X if q == t else _I2) for q in range(n)])
    return a + b


def ref_expval(x_single, w, n=N_QUBITS):
    psi = np.zeros(2 ** n, dtype=np.complex128)
    psi[0] = 1.0
    for i in range(n):
        psi = _single(_rx(x_single[i]), i, n) @ psi
    for i in range(n):
        psi = _single(_rz(w[i]), i, n) @ psi
    for i in range(n - 1):
        psi = _cnot(i, i + 1, n) @ psi
    for i in range(n, 2 * n):
        psi = _single(_rx(w[i]), i - n, n) @ psi
    z0 = _single(np.diag([1.0, -1.0]).astype(np.complex128), 0, n)
    return float(np.real(np.vdot(psi, z0 @ psi)))


# ---------------------------------- main ----------------------------------- #
if __name__ == "__main__":
    key = jax.random.PRNGKey(0)
    kx, kw, kw2, kx2 = jax.random.split(key, 4)

    B = 8  # batch of samples, each with n_qubits=4 input features
    x = jax.random.normal(kx, (B, N_QUBITS), dtype=jnp.float32)
    # QuantumLayer.__init__: 0.01 * randn(2 * n_qubits)
    weights = 0.01 * jax.random.normal(kw, (2 * N_QUBITS,), dtype=jnp.float32)

    y = hybrid_model_forward(x, weights)
    y = jax.block_until_ready(y)

    # Verify against the exact statevector simulation (fp64).
    x_np = np.asarray(x, dtype=np.float64)
    w_np = np.asarray(weights, dtype=np.float64)
    y_ref = np.array([ref_expval(x_np[b], w_np) for b in range(B)])
    assert np.allclose(np.asarray(y, dtype=np.float64), y_ref, atol=1e-5), (y, y_ref)

    # Stronger check: large (O(1)) circuit parameters.
    weights_big = jax.random.uniform(kw2, (2 * N_QUBITS,), dtype=jnp.float32,
                                     minval=-np.pi, maxval=np.pi)
    y_big = jax.block_until_ready(hybrid_model_forward(x, weights_big))
    wb_np = np.asarray(weights_big, dtype=np.float64)
    y_big_ref = np.array([ref_expval(x_np[b], wb_np) for b in range(B)])
    assert np.allclose(np.asarray(y_big, dtype=np.float64), y_big_ref, atol=1e-5), (
        y_big, y_big_ref)

    # Non-multiple-of-128 / larger batch to exercise padding + multi-step grid.
    B2 = 300
    x2 = jax.random.normal(kx2, (B2, N_QUBITS), dtype=jnp.float32)
    y2 = jax.block_until_ready(hybrid_model_forward(x2, weights_big, max_tb=128))
    x2_np = np.asarray(x2, dtype=np.float64)
    y2_ref = np.array([ref_expval(x2_np[b], wb_np) for b in range(B2)])
    assert np.allclose(np.asarray(y2, dtype=np.float64), y2_ref, atol=1e-5)

    print("KERNEL_OK")
</pallas_src>

<mosaic_0001>
module attributes {stable_mosaic.version = 11 : i64} {
  func.func @quantum_expval_kernel(%arg0: i32, %arg1: memref<2xf32, #tpu.memory_space<smem>>, %arg2: memref<2x128xf32, #tpu.memory_space<vmem>>, %arg3: memref<1x128xf32, #tpu.memory_space<vmem>>) attributes {dimension_semantics = [#tpu.dimension_semantics<parallel>], iteration_bounds = array<i64: 1>, scalar_prefetch = 0 : i64, scratch_operands = 0 : i64, tpu.core_type = #tpu.core_type<tc>, window_params = [{transform_indices = @transform_0, window_bounds = array<i64: 2>}, {transform_indices = @transform_1, window_bounds = array<i64: 2, 128>}, {transform_indices = @transform_2, window_bounds = array<i64: 1, 128>}]} {
    %c0 = arith.constant 0 : index
    %0 = memref.load %arg1[%c0] : memref<2xf32, #tpu.memory_space<smem>>
    %c1 = arith.constant 1 : index
    %1 = memref.load %arg1[%c1] : memref<2xf32, #tpu.memory_space<smem>>
    %c0_0 = arith.constant 0 : index
    %c0_1 = arith.constant 0 : index
    %2 = vector.load %arg2[%c0_0, %c0_1] : memref<2x128xf32, #tpu.memory_space<vmem>>, vector<1x128xf32>
    %c1_2 = arith.constant 1 : index
    %c0_3 = arith.constant 0 : index
    %3 = vector.load %arg2[%c1_2, %c0_3] : memref<2x128xf32, #tpu.memory_space<vmem>>, vector<1x128xf32>
    %4 = math.cos %2 : vector<1x128xf32>
    %5 = vector.broadcast %0 : f32 to vector<1x128xf32>
    %6 = arith.mulf %5, %4 : vector<1x128xf32>
    %7 = math.sin %2 : vector<1x128xf32>
    %8 = math.sin %3 : vector<1x128xf32>
    %9 = arith.mulf %7, %8 : vector<1x128xf32>
    %10 = vector.broadcast %1 : f32 to vector<1x128xf32>
    %11 = arith.mulf %10, %9 : vector<1x128xf32>
    %12 = arith.subf %6, %11 : vector<1x128xf32>
    %c0_4 = arith.constant 0 : index
    %c0_5 = arith.constant 0 : index
    %13 = vector.load %arg3[%c0_4, %c0_5] : memref<1x128xf32, #tpu.memory_space<vmem>>, vector<1x128xf32>
    tpu.vector_store %arg3[%c0_4, %c0_5], %12 {strides = array<i32>} : memref<1x128xf32, #tpu.memory_space<vmem>>, vector<1x128xf32>,
    return
  }
  func.func @transform_0(%arg0: i32) -> i32 {
    %c0_i32 = arith.constant 0 : i32
    %c0_i32_0 = arith.constant 0 : i32
    return %c0_i32 : i32
  }
  func.func @transform_1(%arg0: i32) -> (i32, i32) {
    %c0_i32 = arith.constant 0 : i32
    %c0_i32_0 = arith.constant 0 : i32
    return %c0_i32, %arg0 : i32, i32
  }
  func.func @transform_2(%arg0: i32) -> (i32, i32) {
    %c0_i32 = arith.constant 0 : i32
    %c0_i32_0 = arith.constant 0 : i32
    return %c0_i32, %arg0 : i32, i32
  }
}

</mosaic_0001>

<llo_original>
// kernel: tpu_custom_call.1
$region0: #{tpu_custom_call.1}
  #allocation0 [shape = 'u32[]', space=smem, size = 0x4, offset = 0x4, fixed_abs, tag = 'smem constant byte address 0x4 - core index']
  #allocation1 [shape = 'u32[144,128]{1,0:T(1,128)}', space=vmem, size = 0x12000, scoped, tag = 'internal scratch']
  %s0 = inlined_call_operand.hbm [shape: f32[2], index: 0, kind: input, shape index: {}]
  %s1 = inlined_call_operand.hbm [shape: f32[2,128], index: 1, kind: input, shape index: {}]
  %s2 = inlined_call_operand.hbm [shape: f32[1,128], index: 2, kind: output, shape index: {}]
  %s3 = sld [smem:[#allocation0]]
  $region26: #{tpu_custom_call.1} parent=0
    _
  %s5 = ssub.s32 1, %s3
  %s6 = scalar_select 0, %s5, %s3
  $region1: #{tpu_custom_call.1} parent=0
    #allocation2 [shape = 'u8[512]{0}', space=smem, size = 0x200, scoped, tag = 'input window, operand 0, single buffered']
    #allocation3 [shape = 's32[1]{0}', space=sflag, size = 0x4, scoped, tag = 'scoped memory for tpu_custom_call.1']
    #allocation4 [shape = 's32[1]{0}', space=sflag, size = 0x4, scoped, tag = 'scoped memory for tpu_custom_call.1']
    #allocation5 [shape = 's32[1]{0}', space=sflag, size = 0x4, scoped, tag = 'scoped memory for tpu_custom_call.1']
    #allocation6 [shape = 'u8[1024]{0}', space=vmem, size = 0x400, scoped, tag = 'input window, operand 1, single buffered']
    #allocation7 [shape = 'u8[512]{0}', space=vmem, size = 0x400, scoped, tag = 'output window, operand 0, single buffered']
    %7 = vsyncpa [#allocation5], 0
    %8 = vsyncpa [#allocation3], 0
    %9 = vsyncpa [#allocation4], 0
    // Predicated region
    $region2: #{tpu_custom_call.1} parent=1 // pred_check
      _
    $region3: #{tpu_custom_call.1} parent=1 // pred_check_branch
      %11 = sbr.rel (0) target = $region5
    $region4: #{tpu_custom_call.1} parent=1 // pred_region
      %s13 = ssub.s32 16, 16
      %14 = vsyncadd [#allocation5], %s13
      %17 = dma.hbm_to_smem %s0, 16, [#allocation2], [#allocation5]
    $region5: #{tpu_custom_call.1} parent=1 // pred_fallthru
      _
    // Predicated region
    $region6: #{tpu_custom_call.1} parent=1 // pred_check
      _
    $region7: #{tpu_custom_call.1} parent=1 // pred_check_branch
      %19 = sbr.rel (0) target = $region9
    $region8: #{tpu_custom_call.1} parent=1 // pred_region
      %s21 = ssub.s32 32, 32
      %22 = vsyncadd [#allocation3], %s21
      %s24 = sshll.u32 [#allocation6], 4
      %s25 = int_to_ptr.vmem [resolvable:$true] %s24
      %27 = dma.hbm_to_vmem [thread:$0]  %s1, 32, %s25, [#allocation3]
    $region9: #{tpu_custom_call.1} parent=1 // pred_fallthru
      _
    // Predicated region
    $region10: #{tpu_custom_call.1} parent=1 // pred_check
      _
    $region11: #{tpu_custom_call.1} parent=1 // pred_check_branch
      %29 = sbr.rel (0) target = $region13
    $region12: #{tpu_custom_call.1} parent=1 // pred_region
      %30 = dma.done [#allocation5], 16
    $region13: #{tpu_custom_call.1} parent=1 // pred_fallthru
      _
    // Predicated region
    $region14: #{tpu_custom_call.1} parent=1 // pred_check
      _
    $region15: #{tpu_custom_call.1} parent=1 // pred_check_branch
      %32 = sbr.rel (0) target = $region17
    $region16: #{tpu_custom_call.1} parent=1 // pred_region
      %33 = dma.done [#allocation3], 32
    $region17: #{tpu_custom_call.1} parent=1 // pred_fallthru
      _
    %34 = sfence
    %s35 = sld [smem:[#allocation2]]
    %s36 = sld [smem:[#allocation2 + $0x1]]
    %v37 = vld [vmem:[#allocation6] sm:$0x1]
    %v38 = vld [vmem:[#allocation6 + $0x1] sm:$0x1]
    %v39 = vand.u32 2147483647, %v37
    %vm40 = vcmp.le.f32.partialorder %v39, 0.7853982
    %vm41 = vcmp.lt.s32.totalorder %v37, 0
    %v42 = vand.u32 %v37, 2139095040
    %v43 = vshrl.u32 %v42, 23
    %v44 = vsub.s32 %v43, 127
    %v45 = vand.u32 2147483647, %v37
    %v46 = vand.u32 %v45, 8388607
    %v47 = vor.u32 %v46, 8388608
    %v48 = vsub.s32 0, %v47
    %v49 = vadd.s32 %v44, 1
    %vm50 = vcmp.gt.s32.totalorder %v49, 0
    %v51 = vsel %vm50, %v49, 0
    %v52 = vshrl.u32 %v51, 5
    %v53 = vand.u32 %v51, 31
    %v54 = vsub.s32 32, %v53
    %v55 = vshrl.u32 683565275, %v54
    %v56 = vshll.u32 683565275, %v53
    %v57 = vshrl.u32 2475754826, %v54
    %v58 = vor.u32 %v56, %v57
    %v59 = vshll.u32 2475754826, %v53
    %v60 = vshrl.u32 2131351028, %v54
    %v61 = vor.u32 %v59, %v60
    %v62 = vshll.u32 2131351028, %v53
    %v63 = vshrl.u32 2102212464, %v54
    %v64 = vor.u32 %v62, %v63
    %v65 = vshll.u32 2102212464, %v53
    %v66 = vshrl.u32 920167782, %v54
    %v67 = vor.u32 %v65, %v66
    %v68 = vshll.u32 920167782, %v53
    %v69 = vshrl.u32 1326507024, %v54
    %v70 = vor.u32 %v68, %v69
    %vm71 = vcmp.lt.s32.totalorder %v52, 1
    %vm72 = vcmp.lt.s32.totalorder %v52, 2
    %vm73 = vcmp.lt.s32.totalorder %v52, 3
    %vm74 = vcmp.lt.s32.totalorder %v52, 4
    %v75 = vsel %vm71, %v55, %v58
    %v76 = vsel %vm74, %v64, 2102212464
    %v77 = vsel %vm73, %v61, %v76
    %v78 = vsel %vm72, %v75, %v77
    %v79 = vsel %vm71, %v58, %v61
    %v80 = vsel %vm74, %v67, 920167782
    %v81 = vsel %vm73, %v64, %v80
    %v82 = vsel %vm72, %v79, %v81
    %v83 = vsel %vm71, %v61, %v64
    %v84 = vsel %vm74, %v70, 1326507024
    %v85 = vsel %vm73, %v67, %v84
    %v86 = vsel %vm72, %v83, %v85
    %v87 = vshll.u32 %v47, 8
    %v88 = vmul.u32.u64.compose %v87, %v86
    %v89 = vextract.low.u32 %v88
    %v90 = vextract.high.u32 %v88
    %v91 = vmul.u32.u64.compose %v87, %v82
    %v92 = vextract.low.u32 %v91
    %v93 = vextract.high.u32 %v91
    %v94 = vmul.u32 %v87, %v78
    %v95 = vadd.s32 %v90, %v92
    %vm96 = vc.u32 %v90, %v92
    %v97 = vadd.s32 %v93, 1
    %v98 = vsel %vm96, %v97, %v93
    %v99 = vadd.s32 %v94, %v98
    %v100 = vadd.s32 %v99, 536870912
    %v101 = vshrl.u32 %v100, 30
    %v102 = vshll.u32 %v101, 30
    %v103 = vsub.s32 %v99, %v102
    %vm104 = vcmp.lt.s32.totalorder %v103, 0
    %v105 = vsub.s32 0, %v103
    %v106 = vsel %vm104, %v105, %v103
    %v107 = vclz %v106
    %v108 = vsub.s32 %v107, 2
    %vm109 = vcmp.gt.s32.totalorder 0, %v108
    %v110 = vsel %vm109, 0, %v108
    %v111 = vsub.s32 32, %v110
    %v112 = vshll.u32 %v103, %v110
    %v113 = vshrl.u32 %v95, %v111
    %v114 = vor.u32 %v112, %v113
    %v115 = vsub.s32 4294967266, %v110
    %v116 = vadd.s32 %v115, 127
    %v117 = vshll.u32 %v116, 23
    %v118 = vor.u32 4788187, %v117
    %v119 = vand.u32 2147483647, %v118
    %v121 = vcvt.s32.f32 %v114
    %v122 = vmul.f32 %v121, %v119
    %v123 = vxor.u32 %v122, 2147483648
    %v124 = vsel %vm41, %v123, %v122
    %v125 = vsub.s32 4, %v101
    %v126 = vsel %vm41, %v125, %v101
    %v127 = vsel %vm40, %v37, %v124
    %v128 = vsel %vm40, 0, %v126
    %v129 = vcosq.f32.pop %v127
    %v130 = vsinq.f32.pop %v127
    %vm131 = vweird.f32 %v37
    %v132 = vand.u32 %v128, 3
    %vm133 = vcmp.lt.s32.totalorder %v132, 2
    %vm134 = vcmp.eq.s32.totalorder %v132, 0
    %v135 = vxor.u32 %v130, 2147483648
    %v136 = vsel %vm134, %v129, %v135
    %vm137 = vcmp.eq.s32.totalorder %v132, 2
    %v138 = vxor.u32 %v129, 2147483648
    %v139 = vsel %vm137, %v138, %v130
    %v140 = vsel %vm133, %v136, %v139
    %v141 = vsel %vm131, nan, %v140
    %v142 = vstv %s35
    %v143 = vmul.f32 %v142, %v141
    %v144 = vand.u32 2147483647, %v37
    %vm145 = vcmp.le.f32.partialorder %v144, 0.7853982
    %vm146 = vcmp.lt.s32.totalorder %v37, 0
    %v147 = vand.u32 %v37, 2139095040
    %v148 = vshrl.u32 %v147, 23
    %v149 = vsub.s32 %v148, 127
    %v150 = vand.u32 2147483647, %v37
    %v151 = vand.u32 %v150, 8388607
    %v152 = vor.u32 %v151, 8388608
    %v153 = vsub.s32 0, %v152
    %v154 = vadd.s32 %v149, 1
    %vm155 = vcmp.gt.s32.totalorder %v154, 0
    %v156 = vsel %vm155, %v154, 0
    %v157 = vshrl.u32 %v156, 5
    %v158 = vand.u32 %v156, 31
    %v159 = vsub.s32 32, %v158
    %v160 = vshrl.u32 683565275, %v159
    %v161 = vshll.u32 683565275, %v158
    %v162 = vshrl.u32 2475754826, %v159
    %v163 = vor.u32 %v161, %v162
    %v164 = vshll.u32 2475754826, %v158
    %v165 = vshrl.u32 2131351028, %v159
    %v166 = vor.u32 %v164, %v165
    %v167 = vshll.u32 2131351028, %v158
    %v168 = vshrl.u32 2102212464, %v159
    %v169 = vor.u32 %v167, %v168
    %v170 = vshll.u32 2102212464, %v158
    %v171 = vshrl.u32 920167782, %v159
    %v172 = vor.u32 %v170, %v171
    %v173 = vshll.u32 920167782, %v158
    %v174 = vshrl.u32 1326507024, %v159
    %v175 = vor.u32 %v173, %v174
    %vm176 = vcmp.lt.s32.totalorder %v157, 1
    %vm177 = vcmp.lt.s32.totalorder %v157, 2
    %vm178 = vcmp.lt.s32.totalorder %v157, 3
    %vm179 = vcmp.lt.s32.totalorder %v157, 4
    %v180 = vsel %vm176, %v160, %v163
    %v181 = vsel %vm179, %v169, 2102212464
    %v182 = vsel %vm178, %v166, %v181
    %v183 = vsel %vm177, %v180, %v182
    %v184 = vsel %vm176, %v163, %v166
    %v185 = vsel %vm179, %v172, 920167782
    %v186 = vsel %vm178, %v169, %v185
    %v187 = vsel %vm177, %v184, %v186
    %v188 = vsel %vm176, %v166, %v169
    %v189 = vsel %vm179, %v175, 1326507024
    %v190 = vsel %vm178, %v172, %v189
    %v191 = vsel %vm177, %v188, %v190
    %v192 = vshll.u32 %v152, 8
    %v193 = vmul.u32.u64.compose %v192, %v191
    %v194 = vextract.low.u32 %v193
    %v195 = vextract.high.u32 %v193
    %v196 = vmul.u32.u64.compose %v192, %v187
    %v197 = vextract.low.u32 %v196
    %v198 = vextract.high.u32 %v196
    %v199 = vmul.u32 %v192, %v183
    %v200 = vadd.s32 %v195, %v197
    %vm201 = vc.u32 %v195, %v197
    %v202 = vadd.s32 %v198, 1
    %v203 = vsel %vm201, %v202, %v198
    %v204 = vadd.s32 %v199, %v203
    %v205 = vadd.s32 %v204, 536870912
    %v206 = vshrl.u32 %v205, 30
    %v207 = vshll.u32 %v206, 30
    %v208 = vsub.s32 %v204, %v207
    %vm209 = vcmp.lt.s32.totalorder %v208, 0
    %v210 = vsub.s32 0, %v208
    %v211 = vsel %vm209, %v210, %v208
    %v212 = vclz %v211
    %v213 = vsub.s32 %v212, 2
    %vm214 = vcmp.gt.s32.totalorder 0, %v213
    %v215 = vsel %vm214, 0, %v213
    %v216 = vsub.s32 32, %v215
    %v217 = vshll.u32 %v208, %v215
    %v218 = vshrl.u32 %v200, %v216
    %v219 = vor.u32 %v217, %v218
    %v220 = vsub.s32 4294967266, %v215
    %v221 = vadd.s32 %v220, 127
    %v222 = vshll.u32 %v221, 23
    %v223 = vor.u32 4788187, %v222
    %v224 = vand.u32 2147483647, %v223
    %v226 = vcvt.s32.f32 %v219
    %v227 = vmul.f32 %v226, %v224
    %v228 = vxor.u32 %v227, 2147483648
    %v229 = vsel %vm146, %v228, %v227
    %v230 = vsub.s32 4, %v206
    %v231 = vsel %vm146, %v230, %v206
    %v232 = vsel %vm145, %v37, %v229
    %v233 = vsel %vm145, 0, %v231
    %v234 = vcosq.f32.pop %v232
    %v235 = vsinq.f32.pop %v232
    %vm236 = vweird.f32 %v37
    %v237 = vadd.s32 %v233, 3
    %v238 = vand.u32 %v237, 3
    %vm239 = vcmp.lt.s32.totalorder %v238, 2
    %vm240 = vcmp.eq.s32.totalorder %v238, 0
    %v241 = vxor.u32 %v235, 2147483648
    %v242 = vsel %vm240, %v234, %v241
    %vm243 = vcmp.eq.s32.totalorder %v238, 2
    %v244 = vxor.u32 %v234, 2147483648
    %v245 = vsel %vm243, %v244, %v235
    %v246 = vsel %vm239, %v242, %v245
    %v247 = vsel %vm236, nan, %v246
    %v248 = vand.u32 2147483647, %v38
    %vm249 = vcmp.le.f32.partialorder %v248, 0.7853982
    %vm250 = vcmp.lt.s32.totalorder %v38, 0
    %v251 = vand.u32 %v38, 2139095040
    %v252 = vshrl.u32 %v251, 23
    %v253 = vsub.s32 %v252, 127
    %v254 = vand.u32 2147483647, %v38
    %v255 = vand.u32 %v254, 8388607
    %v256 = vor.u32 %v255, 8388608
    %v257 = vsub.s32 0, %v256
    %v258 = vadd.s32 %v253, 1
    %vm259 = vcmp.gt.s32.totalorder %v258, 0
    %v260 = vsel %vm259, %v258, 0
    %v261 = vshrl.u32 %v260, 5
    %v262 = vand.u32 %v260, 31
    %v263 = vsub.s32 32, %v262
    %v264 = vshrl.u32 683565275, %v263
    %v265 = vshll.u32 683565275, %v262
    %v266 = vshrl.u32 2475754826, %v263
    %v267 = vor.u32 %v265, %v266
    %v268 = vshll.u32 2475754826, %v262
    %v269 = vshrl.u32 2131351028, %v263
    %v270 = vor.u32 %v268, %v269
    %v271 = vshll.u32 2131351028, %v262
    %v272 = vshrl.u32 2102212464, %v263
    %v273 = vor.u32 %v271, %v272
    %v274 = vshll.u32 2102212464, %v262
    %v275 = vshrl.u32 920167782, %v263
    %v276 = vor.u32 %v274, %v275
    %v277 = vshll.u32 920167782, %v262
    %v278 = vshrl.u32 1326507024, %v263
    %v279 = vor.u32 %v277, %v278
    %vm280 = vcmp.lt.s32.totalorder %v261, 1
    %vm281 = vcmp.lt.s32.totalorder %v261, 2
    %vm282 = vcmp.lt.s32.totalorder %v261, 3
    %vm283 = vcmp.lt.s32.totalorder %v261, 4
    %v284 = vsel %vm280, %v264, %v267
    %v285 = vsel %vm283, %v273, 2102212464
    %v286 = vsel %vm282, %v270, %v285
    %v287 = vsel %vm281, %v284, %v286
    %v288 = vsel %vm280, %v267, %v270
    %v289 = vsel %vm283, %v276, 920167782
    %v290 = vsel %vm282, %v273, %v289
    %v291 = vsel %vm281, %v288, %v290
    %v292 = vsel %vm280, %v270, %v273
    %v293 = vsel %vm283, %v279, 1326507024
    %v294 = vsel %vm282, %v276, %v293
    %v295 = vsel %vm281, %v292, %v294
    %v296 = vshll.u32 %v256, 8
    %v297 = vmul.u32.u64.compose %v296, %v295
    %v298 = vextract.low.u32 %v297
    %v299 = vextract.high.u32 %v297
    %v300 = vmul.u32.u64.compose %v296, %v291
    %v301 = vextract.low.u32 %v300
    %v302 = vextract.high.u32 %v300
    %v303 = vmul.u32 %v296, %v287
    %v304 = vadd.s32 %v299, %v301
    %vm305 = vc.u32 %v299, %v301
    %v306 = vadd.s32 %v302, 1
    %v307 = vsel %vm305, %v306, %v302
    %v308 = vadd.s32 %v303, %v307
    %v309 = vadd.s32 %v308, 536870912
    %v310 = vshrl.u32 %v309, 30
    %v311 = vshll.u32 %v310, 30
    %v312 = vsub.s32 %v308, %v311
    %vm313 = vcmp.lt.s32.totalorder %v312, 0
    %v314 = vsub.s32 0, %v312
    %v315 = vsel %vm313, %v314, %v312
    %v316 = vclz %v315
    %v317 = vsub.s32 %v316, 2
    %vm318 = vcmp.gt.s32.totalorder 0, %v317
    %v319 = vsel %vm318, 0, %v317
    %v320 = vsub.s32 32, %v319
    %v321 = vshll.u32 %v312, %v319
    %v322 = vshrl.u32 %v304, %v320
    %v323 = vor.u32 %v321, %v322
    %v324 = vsub.s32 4294967266, %v319
    %v325 = vadd.s32 %v324, 127
    %v326 = vshll.u32 %v325, 23
    %v327 = vor.u32 4788187, %v326
    %v328 = vand.u32 2147483647, %v327
    %v330 = vcvt.s32.f32 %v323
    %v331 = vmul.f32 %v330, %v328
    %v332 = vxor.u32 %v331, 2147483648
    %v333 = vsel %vm250, %v332, %v331
    %v334 = vsub.s32 4, %v310
    %v335 = vsel %vm250, %v334, %v310
    %v336 = vsel %vm249, %v38, %v333
    %v337 = vsel %vm249, 0, %v335
    %v338 = vcosq.f32.pop %v336
    %v339 = vsinq.f32.pop %v336
    %vm340 = vweird.f32 %v38
    %v341 = vadd.s32 %v337, 3
    %v342 = vand.u32 %v341, 3
    %vm343 = vcmp.lt.s32.totalorder %v342, 2
    %vm344 = vcmp.eq.s32.totalorder %v342, 0
    %v345 = vxor.u32 %v339, 2147483648
    %v346 = vsel %vm344, %v338, %v345
    %vm347 = vcmp.eq.s32.totalorder %v342, 2
    %v348 = vxor.u32 %v338, 2147483648
    %v349 = vsel %vm347, %v348, %v339
    %v350 = vsel %vm343, %v346, %v349
    %v351 = vsel %vm340, nan, %v350
    %v352 = vmul.f32 %v247, %v351
    %v353 = vstv %s36
    %v354 = vmul.f32 %v353, %v352
    %v355 = vsub.f32 %v143, %v354
    %356 = vst [vmem:[#allocation7] sm:$0x1] %v355
    // Predicated region
    $region18: #{tpu_custom_call.1} parent=1 // pred_check
      _
    $region19: #{tpu_custom_call.1} parent=1 // pred_check_branch
      %358 = sbr.rel (0) target = $region21
    $region20: #{tpu_custom_call.1} parent=1 // pred_region
      %s360 = ssub.s32 16, 16
      %361 = vsyncadd [#allocation4], %s360
      %s363 = sshll.u32 [#allocation7], 4
      %s364 = int_to_ptr.vmem [resolvable:$true] %s363
      %366 = dma.vmem_to_hbm [thread:$0]  %s364, 16, %s2, [#allocation4]
    $region21: #{tpu_custom_call.1} parent=1 // pred_fallthru
      _
    // Predicated region
    $region22: #{tpu_custom_call.1} parent=1 // pred_check
      _
    $region23: #{tpu_custom_call.1} parent=1 // pred_check_branch
      %368 = sbr.rel (0) target = $region25
    $region24: #{tpu_custom_call.1} parent=1 // pred_region
      %369 = dma.done [#allocation4], 16
    $region25: #{tpu_custom_call.1} parent=1 // pred_fallthru
      _
    %370 = vsyncpa [#allocation3], 1
    %371 = vsyncpa [#allocation4], 1
    %372 = vsyncpa [#allocation5], 1

</llo_original>
